<compile_context>
chip_gen: v6e
topology: v6e:2x2x1
jax: 0.10.0
libtpu: 0.0.40
codegen_flags: <defaults>
</compile_context>

<pallas_src>
import functools

import jax
import jax.numpy as jnp
from jax.experimental import pallas as pl
from jax.experimental.pallas import tpu as pltpu


# ----------------------------------------------------------------------------
# Pass 1: fused f32 -> bf16 cast + per-(B, C) channel-sum reduction.
# ----------------------------------------------------------------------------
def _cast_sum_kernel(x_ref, xbf_ref, sum_ref, *, hw, tile, need_mask):
    # x_ref  : (1, C, T) f32  (boundary tile may contain out-of-bounds garbage)
    # xbf_ref: (1, C, T) bf16
    # sum_ref: (1, C, 1) f32  (accumulated across the T grid axis)
    x = x_ref[0]
    if need_mask:
        t = pl.program_id(1)
        lane = jax.lax.broadcasted_iota(jnp.int32, x.shape, 1)
        x = jnp.where(t * tile + lane < hw, x, 0.0)
    xbf_ref[0] = x.astype(jnp.bfloat16)

    @pl.when(pl.program_id(1) == 0)
    def _():
        sum_ref[...] = jnp.zeros_like(sum_ref)

    sum_ref[0] += jnp.sum(x, axis=1, keepdims=True)


# ----------------------------------------------------------------------------
# Pass 2: main streaming kernel (local 1x1 convs + fused gate).
# ----------------------------------------------------------------------------
def _msca_kernel(x_ref, w1_ref, b1_ref, w2_ref, b2_ref, o_ref):
    # x_ref : (1, C, T) bf16  (NCHW tile, HW on the lane axis)
    # w1    : (Cp, C) bf16 ; b1: (Cp, 1) f32      (conv1 + folded BN)
    # w2    : (C, Cp) bf16 ; b2: (1, C, 1) f32    (conv2 bias + per-batch global logits)
    x_bf = x_ref[0]                                                    # (C, T) bf16

    h = jnp.dot(w1_ref[...], x_bf, preferred_element_type=jnp.float32) + b1_ref[...]
    h = jnp.maximum(h, 0.0).astype(jnp.bfloat16)                       # (Cp, T)
    xl = jnp.dot(w2_ref[...], h, preferred_element_type=jnp.float32) + b2_ref[0]

    # sigmoid via EUP (exp + approx reciprocal) keeps the VALU slot free.
    wei = pl.reciprocal(1.0 + jnp.exp(-xl), approx=True)               # (C, T) f32
    # bf16 gate multiply: no f32 materialization of x (v6e/v7x bf16 VPU;
    # harmless on v5e where the kernel is HBM-bound anyway).
    o_ref[0] = x_bf * wei.astype(jnp.bfloat16)


# ----------------------------------------------------------------------------
# Glue helpers.
# ----------------------------------------------------------------------------
def _fold_bn(w, b, gamma, beta, mean, var, eps=1e-5):
    """Fold eval-mode BatchNorm into a preceding 1x1 conv.

    w: (Cout, Cin), b: (Cout,). Returns (w', b') with b' shaped (Cout, 1)."""
    scale = gamma / jnp.sqrt(var + eps)                                # (Cout,)
    w_f = w * scale[:, None]
    b_f = (b - mean) * scale + beta
    return w_f, b_f.reshape(-1, 1)


def _pick_hw_tile(hw, c, cp, batch, vmem_limit, weight_bytes):
    """Lane-aligned HW tile.

    Multiple of 128, capped at 2048, bounded by the VMEM budget (bf16 in/out
    double buffers + in-kernel f32/bf16 intermediates ~ (24*C + 8*Cp) bytes per
    lane), never larger than HW, and shrunk (not below 512) to expose >= 4 grid
    points for v7x's two TensorCores."""
    if hw <= 128:
        return hw                                   # full-extent block (exempt)
    per_lane = 24 * c + 8 * cp
    budget = max(vmem_limit - weight_bytes - (6 << 20), 1 << 20)
    t_vmem = max(128, (budget // per_lane) // 128 * 128)
    t_data = (hw // 128) * 128                      # keep T <= HW
    t = min(2048, t_vmem, t_data)
    # v7x megacore load balance: aim for >= 4 grid points without dropping below 512.
    while t > 512 and batch * ((hw + t - 1) // t) < 4:
        t = max(512, ((t // 2 + 127) // 128) * 128)
    return t


def msca_forward(x_nchw, params):
    """x_nchw: (B, C, H, W) float32. Returns (B, C, H, W) bfloat16."""
    B, C, H, W = x_nchw.shape
    HW = H * W
    (wl1, bl1, wl2, bl2, wg1, bg1, wg2, bg2) = params
    Cp = wl1.shape[0]

    x = x_nchw.reshape(B, C, HW)                    # keep NCHW; reshape is free

    # Generation-aware VMEM budget (v7x has 64 MiB/TC vs 128 MiB on v5e/v6e).
    try:
        vmem_cap = int(getattr(pltpu.get_tpu_info(), "vmem_capacity_bytes", 64 << 20))
    except Exception:
        vmem_cap = 64 << 20
    vmem_limit = int(min(48 << 20, max(vmem_cap - (16 << 20), 16 << 20)))

    # Double-buffered bf16 weights + f32 biases (small, but counted).
    weight_bytes = 2 * (4 * Cp * C + 4 * (Cp + C) + 64)
    T = _pick_hw_tile(HW, C, Cp, B, vmem_limit, weight_bytes)
    n_t = -(-HW // T)
    need_mask = (HW % T) != 0

    # ---- Pass 1: fused cast + per-(B,C) sums (single HBM read of the f32 input).
    pro_kernel = functools.partial(_cast_sum_kernel, hw=HW, tile=T, need_mask=need_mask)
    x_bf, sums = pl.pallas_call(
        pro_kernel,
        out_shape=(jax.ShapeDtypeStruct((B, C, HW), jnp.bfloat16),
                   jax.ShapeDtypeStruct((B, C, 1), jnp.float32)),
        grid_spec=pltpu.PrefetchScalarGridSpec(
            num_scalar_prefetch=0,
            grid=(B, n_t),
            in_specs=[pl.BlockSpec((1, C, T), lambda b, t: (b, 0, t))],
            out_specs=[pl.BlockSpec((1, C, T), lambda b, t: (b, 0, t)),
                       pl.BlockSpec((1, C, 1), lambda b, t: (b, 0, 0))],
        ),
        compiler_params=pltpu.CompilerParams(
            dimension_semantics=("parallel", "arbitrary"),
            vmem_limit_bytes=vmem_limit),
        cost_estimate=pl.CostEstimate(
            flops=2 * B * C * HW,
            transcendentals=0,
            bytes_accessed=6 * B * C * HW + 4 * B * C),
    )(x)

    # ---- Tiny global-attention branch (adaptive-avg-pool -> two 1x1 convs on a
    #      (B, C) vector), folded into the second local-conv bias.
    xm = sums[:, :, 0] * (1.0 / HW)                                    # (B, C) f32
    hg = jnp.maximum(jnp.einsum('kc,bc->bk', wg1, xm) + bg1.reshape(1, Cp), 0.0)
    xg = jnp.einsum('ck,bk->bc', wg2, hg) + bg2.reshape(1, C)          # (B, C)
    b2_eff = (bl2.reshape(1, C, 1) + xg[:, :, None]).astype(jnp.float32)

    wl1_bf = wl1.astype(jnp.bfloat16)
    wl2_bf = wl2.astype(jnp.bfloat16)

    # NOTE: the three weight inputs have constant index_maps; single-buffering
    # them (pipeline_mode=pl.Buffered(1)) would save a little VMEM on v7x but is
    # not needed at these sizes.
    const = lambda shape: pl.BlockSpec(shape, lambda b, t: (0, 0))

    # ---- Pass 2: main streaming kernel (bf16 in/out, lane-dense stores).
    out = pl.pallas_call(
        _msca_kernel,
        out_shape=jax.ShapeDtypeStruct((B, C, HW), jnp.bfloat16),
        grid_spec=pltpu.PrefetchScalarGridSpec(
            num_scalar_prefetch=0,
            grid=(B, n_t),
            in_specs=[
                pl.BlockSpec((1, C, T), lambda b, t: (b, 0, t)),   # x tile (bf16)
                const((Cp, C)), const((Cp, 1)),                    # conv1 (+BN folded)
                const((C, Cp)),                                    # conv2 (+BN folded)
                pl.BlockSpec((1, C, 1), lambda b, t: (b, 0, 0)),   # conv2 bias + global logits
            ],
            out_specs=pl.BlockSpec((1, C, T), lambda b, t: (b, 0, t)),
        ),
        compiler_params=pltpu.CompilerParams(
            dimension_semantics=("parallel", "parallel"),
            vmem_limit_bytes=vmem_limit),
        cost_estimate=pl.CostEstimate(
            flops=4 * B * HW * C * Cp,
            transcendentals=2 * B * HW * C,
            bytes_accessed=4 * B * C * HW + 4 * Cp * C + 4 * B * C),
    )(x_bf, wl1_bf, bl1, wl2_bf, b2_eff)

    return out.reshape(B, C, H, W)


def make_params(key, channels, r=16):
    """Deterministic synthetic parameters matching MSCA.__init__ shapes.

    Weights are (Cout, Cin) 1x1-conv matrices (PyTorch conv orientation)."""
    C = channels
    Cp = int(C // r)
    ks = jax.random.split(key, 12)

    conv_w = lambda k, cout, cin: 0.1 * jax.random.normal(k, (cout, cin), jnp.float32)
    conv_b = lambda k, cout: 0.1 * jax.random.normal(k, (cout,), jnp.float32)

    def bn(k, c):
        g = 1.0 + 0.1 * jax.random.normal(jax.random.fold_in(k, 0), (c,), jnp.float32)
        b = 0.1 * jax.random.normal(jax.random.fold_in(k, 1), (c,), jnp.float32)
        m = 0.05 * jax.random.normal(jax.random.fold_in(k, 2), (c,), jnp.float32)
        v = 0.5 + jnp.abs(jax.random.normal(jax.random.fold_in(k, 3), (c,), jnp.float32))
        return g, b, m, v

    wl1, bl1 = _fold_bn(conv_w(ks[0], Cp, C), conv_b(ks[1], Cp), *bn(ks[2], Cp))
    wl2, bl2 = _fold_bn(conv_w(ks[3], C, Cp), conv_b(ks[4], C), *bn(ks[5], C))
    wg1, bg1 = _fold_bn(conv_w(ks[6], Cp, C), conv_b(ks[7], Cp), *bn(ks[8], Cp))
    wg2, bg2 = _fold_bn(conv_w(ks[9], C, Cp), conv_b(ks[10], C), *bn(ks[11], C))
    return (wl1, bl1, wl2, bl2, wg1, bg1, wg2, bg2)


def msca_reference(x_nchw, params):
    """Plain-JAX reference mirroring the kernel's mixed-precision choices."""
    (wl1, bl1, wl2, bl2, wg1, bg1, wg2, bg2) = params
    B, C, H, W = x_nchw.shape
    Cp = wl1.shape[0]
    f32 = jnp.float32

    x = x_nchw.reshape(B, C, H * W).astype(f32)
    xb = x.astype(jnp.bfloat16).astype(f32)

    w1 = wl1.astype(jnp.bfloat16).astype(f32)
    w2 = wl2.astype(jnp.bfloat16).astype(f32)

    # local branch (bf16 operands, f32 accumulation, bf16-rounded intermediate)
    h = jnp.maximum(jnp.einsum('kc,bct->bkt', w1, xb) + bl1.reshape(1, Cp, 1), 0.0)
    h = h.astype(jnp.bfloat16).astype(f32)
    xl = jnp.einsum('ck,bkt->bct', w2, h) + bl2.reshape(1, C, 1)

    # global branch (f32 mean of the original f32 input, as in the fused prologue)
    xm = jnp.mean(x, axis=2)
    hg = jnp.maximum(jnp.einsum('kc,bc->bk', wg1, xm) + bg1.reshape(1, Cp), 0.0)
    xg = jnp.einsum('ck,bk->bc', wg2, hg) + bg2.reshape(1, C)

    wei = jax.nn.sigmoid(xl + xg[:, :, None]).astype(jnp.bfloat16).astype(f32)
    out = (xb * wei).astype(jnp.bfloat16)
    return out.reshape(B, C, H, W)


if __name__ == "__main__":
    # channels must be a multiple of r=16 so out_channels = channels // r >= 1
    B, C, H, W = 2, 32, 16, 16
    key = jax.random.PRNGKey(0)
    kx, kp = jax.random.split(key)

    x = jax.random.normal(kx, (B, C, H, W), jnp.float32)
    params = make_params(kp, C, r=16)

    y = jax.jit(msca_forward)(x, params)
    y = jax.block_until_ready(y)

    y_ref = msca_reference(x, params)
    assert y.shape == (B, C, H, W)
    assert jnp.allclose(y.astype(jnp.float32), y_ref.astype(jnp.float32),
                        rtol=2e-2, atol=2e-2), "mismatch vs reference"

    print("KERNEL_OK")
</pallas_src>

<mosaic_0001>
module attributes {stable_mosaic.version = 11 : i64} {
  func.func @_cast_sum_kernel(%arg0: i32, %arg1: i32, %arg2: memref<1x32x256xf32, #tpu.memory_space<vmem>>, %arg3: memref<1x32x256xbf16, #tpu.memory_space<vmem>>, %arg4: memref<1x32x1xf32, #tpu.memory_space<vmem>>) attributes {dimension_semantics = [#tpu.dimension_semantics<parallel>, #tpu.dimension_semantics<arbitrary>], iteration_bounds = array<i64: 2, 1>, scalar_prefetch = 0 : i64, scratch_operands = 0 : i64, tpu.core_type = #tpu.core_type<tc>, window_params = [{transform_indices = @transform_0, window_bounds = array<i64: 1, 32, 256>}, {transform_indices = @transform_1, window_bounds = array<i64: 1, 32, 256>}, {transform_indices = @transform_2, window_bounds = array<i64: 1, 32, 1>}]} {
    %c0 = arith.constant 0 : index
    %c0_0 = arith.constant 0 : index
    %c0_1 = arith.constant 0 : index
    %0 = vector.load %arg2[%c0, %c0_0, %c0_1] : memref<1x32x256xf32, #tpu.memory_space<vmem>>, vector<1x32x256xf32>
    %1 = vector.shape_cast %0 : vector<1x32x256xf32> to vector<32x256xf32>
    %2 = arith.truncf %1 : vector<32x256xf32> to vector<32x256xbf16>
    %c0_2 = arith.constant 0 : index
    %c0_3 = arith.constant 0 : index
    %c0_4 = arith.constant 0 : index
    %3 = vector.load %arg3[%c0_2, %c0_3, %c0_4] : memref<1x32x256xbf16, #tpu.memory_space<vmem>>, vector<1x32x256xbf16>
    %4 = vector.shape_cast %3 : vector<1x32x256xbf16> to vector<32x256xbf16>
    %5 = vector.shape_cast %2 : vector<32x256xbf16> to vector<1x32x256xbf16>
    tpu.vector_store %arg3[%c0_2, %c0_3, %c0_4], %5 {strides = array<i32>} : memref<1x32x256xbf16, #tpu.memory_space<vmem>>, vector<1x32x256xbf16>,
    %c0_i32 = arith.constant 0 : i32
    %6 = arith.cmpi eq, %arg1, %c0_i32 : i32
    %7 = arith.extui %6 : i1 to i32
    %c0_i32_5 = arith.constant 0 : i32
    %8 = arith.cmpi ne, %7, %c0_i32_5 : i32
    scf.if %8 {
      %cst_12 = arith.constant 0.000000e+00 : f32
      %17 = vector.broadcast %cst_12 : f32 to vector<1x32x1xf32>
      %c0_13 = arith.constant 0 : index
      %c0_14 = arith.constant 0 : index
      %c0_15 = arith.constant 0 : index
      %18 = vector.load %arg4[%c0_13, %c0_14, %c0_15] : memref<1x32x1xf32, #tpu.memory_space<vmem>>, vector<1x32x1xf32>
      tpu.vector_store %arg4[%c0_13, %c0_14, %c0_15], %17 {strides = array<i32>} : memref<1x32x1xf32, #tpu.memory_space<vmem>>, vector<1x32x1xf32>,
    } else {
    }
    %c0_6 = arith.constant 0 : index
    %c0_7 = arith.constant 0 : index
    %c0_8 = arith.constant 0 : index
    %9 = vector.load %arg4[%c0_6, %c0_7, %c0_8] : memref<1x32x1xf32, #tpu.memory_space<vmem>>, vector<1x32x1xf32>
    %10 = vector.shape_cast %9 : vector<1x32x1xf32> to vector<32x1xf32>
    %cst = arith.constant dense<0.000000e+00> : vector<32xf32>
    %11 = vector.multi_reduction <add>, %1, %cst [1] : vector<32x256xf32> to vector<32xf32>
    %12 = vector.shape_cast %11 : vector<32xf32> to vector<32x1xf32>
    %13 = arith.addf %10, %12 : vector<32x1xf32>
    %c0_9 = arith.constant 0 : index
    %c0_10 = arith.constant 0 : index
    %c0_11 = arith.constant 0 : index
    %14 = vector.load %arg4[%c0_9, %c0_10, %c0_11] : memref<1x32x1xf32, #tpu.memory_space<vmem>>, vector<1x32x1xf32>
    %15 = vector.shape_cast %14 : vector<1x32x1xf32> to vector<32x1xf32>
    %16 = vector.shape_cast %13 : vector<32x1xf32> to vector<1x32x1xf32>
    tpu.vector_store %arg4[%c0_9, %c0_10, %c0_11], %16 {strides = array<i32>} : memref<1x32x1xf32, #tpu.memory_space<vmem>>, vector<1x32x1xf32>,
    return
  }
  func.func @transform_0(%arg0: i32, %arg1: i32) -> (i32, i32, i32) {
    %c0_i32 = arith.constant 0 : i32
    %c0_i32_0 = arith.constant 0 : i32
    return %arg0, %c0_i32, %arg1 : i32, i32, i32
  }
  func.func @transform_1(%arg0: i32, %arg1: i32) -> (i32, i32, i32) {
    %c0_i32 = arith.constant 0 : i32
    %c0_i32_0 = arith.constant 0 : i32
    return %arg0, %c0_i32, %arg1 : i32, i32, i32
  }
  func.func @transform_2(%arg0: i32, %arg1: i32) -> (i32, i32, i32) {
    %c0_i32 = arith.constant 0 : i32
    %c0_i32_0 = arith.constant 0 : i32
    %c0_i32_1 = arith.constant 0 : i32
    return %arg0, %c0_i32, %c0_i32_0 : i32, i32, i32
  }
}

module attributes {stable_mosaic.version = 11 : i64} {
  func.func @_msca_kernel(%arg0: i32, %arg1: i32, %arg2: memref<1x32x256xbf16, #tpu.memory_space<vmem>>, %arg3: memref<2x32xbf16, #tpu.memory_space<vmem>>, %arg4: memref<2x1xf32, #tpu.memory_space<vmem>>, %arg5: memref<32x2xbf16, #tpu.memory_space<vmem>>, %arg6: memref<1x32x1xf32, #tpu.memory_space<vmem>>, %arg7: memref<1x32x256xbf16, #tpu.memory_space<vmem>>) attributes {dimension_semantics = [#tpu.dimension_semantics<parallel>, #tpu.dimension_semantics<parallel>], iteration_bounds = array<i64: 2, 1>, scalar_prefetch = 0 : i64, scratch_operands = 0 : i64, tpu.core_type = #tpu.core_type<tc>, window_params = [{transform_indices = @transform_0, window_bounds = array<i64: 1, 32, 256>}, {pipeline_mode = #tpu.pipeline_mode<synchronous>, transform_indices = @transform_1, window_bounds = array<i64: 2, 32>}, {pipeline_mode = #tpu.pipeline_mode<synchronous>, transform_indices = @transform_2, window_bounds = array<i64: 2, 1>}, {pipeline_mode = #tpu.pipeline_mode<synchronous>, transform_indices = @transform_3, window_bounds = array<i64: 32, 2>}, {transform_indices = @transform_4, window_bounds = array<i64: 1, 32, 1>}, {transform_indices = @transform_5, window_bounds = array<i64: 1, 32, 256>}]} {
    %c0 = arith.constant 0 : index
    %c0_0 = arith.constant 0 : index
    %c0_1 = arith.constant 0 : index
    %0 = vector.load %arg2[%c0, %c0_0, %c0_1] : memref<1x32x256xbf16, #tpu.memory_space<vmem>>, vector<1x32x256xbf16>
    %1 = vector.shape_cast %0 : vector<1x32x256xbf16> to vector<32x256xbf16>
    %c0_2 = arith.constant 0 : index
    %c0_3 = arith.constant 0 : index
    %2 = vector.load %arg3[%c0_2, %c0_3] : memref<2x32xbf16, #tpu.memory_space<vmem>>, vector<2x32xbf16>
    %cst = arith.constant dense<0.000000e+00> : vector<2x256xf32>
    %3 = tpu.matmul %2, %1, %cst {dimension_numbers = #tpu.dot_dimension_numbers<[1], [0], [0], [1], [0, 0, 1, 1], [], []>} : vector<2x32xbf16>, vector<32x256xbf16>, vector<2x256xf32> -> vector<2x256xf32>
    %c0_4 = arith.constant 0 : index
    %c0_5 = arith.constant 0 : index
    %4 = vector.load %arg4[%c0_4, %c0_5] : memref<2x1xf32, #tpu.memory_space<vmem>>, vector<2x1xf32>
    %5 = vector.broadcast %4 : vector<2x1xf32> to vector<2x256xf32>
    %6 = arith.addf %3, %5 : vector<2x256xf32>
    %cst_6 = arith.constant 0.000000e+00 : f32
    %7 = vector.broadcast %cst_6 : f32 to vector<2x256xf32>
    %8 = arith.maximumf %6, %7 : vector<2x256xf32>
    %9 = arith.truncf %8 : vector<2x256xf32> to vector<2x256xbf16>
    %c0_7 = arith.constant 0 : index
    %c0_8 = arith.constant 0 : index
    %10 = vector.load %arg5[%c0_7, %c0_8] : memref<32x2xbf16, #tpu.memory_space<vmem>>, vector<32x2xbf16>
    %cst_9 = arith.constant dense<0.000000e+00> : vector<32x256xf32>
    %11 = tpu.matmul %10, %9, %cst_9 {dimension_numbers = #tpu.dot_dimension_numbers<[1], [0], [0], [1], [0, 0, 1, 1], [], []>} : vector<32x2xbf16>, vector<2x256xbf16>, vector<32x256xf32> -> vector<32x256xf32>
    %c0_10 = arith.constant 0 : index
    %c0_11 = arith.constant 0 : index
    %c0_12 = arith.constant 0 : index
    %12 = vector.load %arg6[%c0_10, %c0_11, %c0_12] : memref<1x32x1xf32, #tpu.memory_space<vmem>>, vector<1x32x1xf32>
    %13 = vector.shape_cast %12 : vector<1x32x1xf32> to vector<32x1xf32>
    %14 = vector.broadcast %13 : vector<32x1xf32> to vector<32x256xf32>
    %15 = arith.addf %11, %14 : vector<32x256xf32>
    %cst_13 = arith.constant 0.000000e+00 : f32
    %16 = vector.broadcast %cst_13 : f32 to vector<32x256xf32>
    %17 = arith.subf %16, %15 : vector<32x256xf32>
    %18 = math.exp %17 : vector<32x256xf32>
    %cst_14 = arith.constant 1.000000e+00 : f32
    %19 = vector.broadcast %cst_14 : f32 to vector<32x256xf32>
    %20 = arith.addf %19, %18 : vector<32x256xf32>
    %21 = tpu.reciprocal %20 {approx = true} : vector<32x256xf32> -> vector<32x256xf32>
    %22 = arith.truncf %21 : vector<32x256xf32> to vector<32x256xbf16>
    %23 = arith.mulf %1, %22 : vector<32x256xbf16>
    %c0_15 = arith.constant 0 : index
    %c0_16 = arith.constant 0 : index
    %c0_17 = arith.constant 0 : index
    %24 = vector.load %arg7[%c0_15, %c0_16, %c0_17] : memref<1x32x256xbf16, #tpu.memory_space<vmem>>, vector<1x32x256xbf16>
    %25 = vector.shape_cast %24 : vector<1x32x256xbf16> to vector<32x256xbf16>
    %26 = vector.shape_cast %23 : vector<32x256xbf16> to vector<1x32x256xbf16>
    tpu.vector_store %arg7[%c0_15, %c0_16, %c0_17], %26 {strides = array<i32>} : memref<1x32x256xbf16, #tpu.memory_space<vmem>>, vector<1x32x256xbf16>,
    return
  }
  func.func @transform_0(%arg0: i32, %arg1: i32) -> (i32, i32, i32) {
    %c0_i32 = arith.constant 0 : i32
    %c0_i32_0 = arith.constant 0 : i32
    return %arg0, %c0_i32, %arg1 : i32, i32, i32
  }
  func.func @transform_1(%arg0: i32, %arg1: i32) -> (i32, i32) {
    %c0_i32 = arith.constant 0 : i32
    %c0_i32_0 = arith.constant 0 : i32
    %c0_i32_1 = arith.constant 0 : i32
    return %c0_i32, %c0_i32_0 : i32, i32
  }
  func.func @transform_2(%arg0: i32, %arg1: i32) -> (i32, i32) {
    %c0_i32 = arith.constant 0 : i32
    %c0_i32_0 = arith.constant 0 : i32
    %c0_i32_1 = arith.constant 0 : i32
    return %c0_i32, %c0_i32_0 : i32, i32
  }
  func.func @transform_3(%arg0: i32, %arg1: i32) -> (i32, i32) {
    %c0_i32 = arith.constant 0 : i32
    %c0_i32_0 = arith.constant 0 : i32
    %c0_i32_1 = arith.constant 0 : i32
    return %c0_i32, %c0_i32_0 : i32, i32
  }
  func.func @transform_4(%arg0: i32, %arg1: i32) -> (i32, i32, i32) {
    %c0_i32 = arith.constant 0 : i32
    %c0_i32_0 = arith.constant 0 : i32
    %c0_i32_1 = arith.constant 0 : i32
    return %arg0, %c0_i32, %c0_i32_0 : i32, i32, i32
  }
  func.func @transform_5(%arg0: i32, %arg1: i32) -> (i32, i32, i32) {
    %c0_i32 = arith.constant 0 : i32
    %c0_i32_0 = arith.constant 0 : i32
    return %arg0, %c0_i32, %arg1 : i32, i32, i32
  }
}

</mosaic_0001>

<llo_original>
// kernel: msca_forward.2
$region0: #{msca_forward.2}
  #allocation0 [shape = 'u32[]', space=smem, size = 0x4, offset = 0x4, fixed_abs, tag = 'smem constant byte address 0x4 - core index']
  #allocation1 [shape = 'u32[144,128]{1,0:T(1,128)}', space=vmem, size = 0x12000, scoped, tag = 'internal scratch']
  %s0 = inlined_call_operand.vmem [shape: f32[2,32,256], index: 0, kind: input, shape index: {}]
  %s1 = inlined_call_operand.vmem [shape: bf16[2,32,256], index: 1, kind: output, shape index: {0}]
  %s2 = inlined_call_operand.vmem [shape: f32[2,32,1], index: 2, kind: output, shape index: {1}]
  %3 = xla_tuple %s1, %s2
  %s4 = sld [smem:[#allocation0]]
  $region49: #{msca_forward.2} parent=0
    _
  %s6 = ssub.s32 1, %s4
  %s7 = scalar_select 0, %s6, %s4
  loop: start=0, step=1, limit=4
  $region2: #{msca_forward.2} parent=0 // loop_pre_header
    _
  $region3: #{msca_forward.2} parent=0 // loop_header
    %s9 = sphi 0, %s13
    %p10 = scmp.ge.s32.totalorder %s9, 4
    %s16 = sphi 0, %s28
    %s17 = sphi 0, %s24
    %s18 = sphi 0, %s16
    %s19 = sphi 0, %s17
    %s20 = sphi 0, %s18
    %s21 = sphi 0, %s19
    %s33 = sphi 0, %s35
    %s36 = sphi 0, %s33
    %s37 = sphi 0, %s36
    %s53 = sphi 0, %s37
    %s61 = sphi 0, %s63
    %s64 = sphi 0, %s61
    %s65 = sphi 0, %s64
    %s81 = sphi 0, %s65
    %s87 = sphi 0, %s89
    %s90 = sphi 0, %s87
    %s91 = sphi 0, %s90
    %s107 = sphi 0, %s91
  $region4: #{msca_forward.2} parent=0 // loop_header_branch
    %12 = sbr.rel (%p10) target = $region8
  $region5: #{msca_forward.2} parent=0 // loop_body
    %s14 = ssub.s32 %s9, 1
    %s15 = ssub.s32 %s9, 2
    %s22 = sadd.s32 1, %s17
    %p23 = scmp.ge.s32.totalorder %s22, 1
    %s24 = scalar_select %p23, 0, %s22
    %s25 = sadd.s32 1, %s16
    %s26 = scalar_select %p23, %s25, %s16
    %p27 = scmp.ge.s32.totalorder %s26, 2
    %s28 = scalar_select %p27, 0, %s26
    %s29 = ssub.s32 %s16, %s28
    %s30 = ssub.s32 %s17, %s24
    %s31 = sor.u32 %s29, %s30
    %p32 = scmp.eq.s32.totalorder %s31, 0
    %s34 = sadd.s32 %s33, 1
    %s35 = scalar_select %p32, %s33, %s34
    %p38 = pneg %p32
    %p39 = scmp.eq.s32.totalorder %s9, 1
    %p40 = por %p38, %p39
    %p41 = scmp.ne.s32.totalorder %s33, %s36
    %p42 = scmp.eq.s32.totalorder %s9, 0
    %p43 = por %p41, %p42
    %p44 = scmp.ne.s32.totalorder %s33, %s36
    %p45 = scmp.eq.s32.totalorder %s14, 1
    %p46 = por %p44, %p45
    %p47 = scmp.ne.s32.totalorder %s36, %s37
    %p48 = scmp.eq.s32.totalorder %s14, 0
    %p49 = por %p47, %p48
    %p50 = scmp.ne.s32.totalorder %s36, %s37
    %p51 = scmp.eq.s32.totalorder %s15, 1
    %p52 = por %p50, %p51
    %p54 = scmp.ne.s32.totalorder %s37, %s53
    %p55 = scmp.eq.s32.totalorder %s15, 0
    %p56 = por %p54, %p55
    %s57 = ssub.s32 %s16, %s28
    %s58 = ssub.s32 %s17, %s24
    %s59 = sor.u32 %s57, %s58
    %p60 = scmp.eq.s32.totalorder %s59, 0
    %s62 = sadd.s32 %s61, 1
    %s63 = scalar_select %p60, %s61, %s62
    %p66 = pneg %p60
    %p67 = scmp.eq.s32.totalorder %s9, 1
    %p68 = por %p66, %p67
    %p69 = scmp.ne.s32.totalorder %s61, %s64
    %p70 = scmp.eq.s32.totalorder %s9, 0
    %p71 = por %p69, %p70
    %p72 = scmp.ne.s32.totalorder %s61, %s64
    %p73 = scmp.eq.s32.totalorder %s14, 1
    %p74 = por %p72, %p73
    %p75 = scmp.ne.s32.totalorder %s64, %s65
    %p76 = scmp.eq.s32.totalorder %s14, 0
    %p77 = por %p75, %p76
    %p78 = scmp.ne.s32.totalorder %s64, %s65
    %p79 = scmp.eq.s32.totalorder %s15, 1
    %p80 = por %p78, %p79
    %p82 = scmp.ne.s32.totalorder %s65, %s81
    %p83 = scmp.eq.s32.totalorder %s15, 0
    %p84 = por %p82, %p83
    %s85 = ssub.s32 %s16, %s28
    %p86 = scmp.eq.s32.totalorder %s85, 0
    %s88 = sadd.s32 %s87, 1
    %s89 = scalar_select %p86, %s87, %s88
    %p92 = pneg %p86
    %p93 = scmp.eq.s32.totalorder %s9, 1
    %p94 = por %p92, %p93
    %p95 = scmp.ne.s32.totalorder %s87, %s90
    %p96 = scmp.eq.s32.totalorder %s9, 0
    %p97 = por %p95, %p96
    %p98 = scmp.ne.s32.totalorder %s87, %s90
    %p99 = scmp.eq.s32.totalorder %s14, 1
    %p100 = por %p98, %p99
    %p101 = scmp.ne.s32.totalorder %s90, %s91
    %p102 = scmp.eq.s32.totalorder %s14, 0
    %p103 = por %p101, %p102
    %p104 = scmp.ne.s32.totalorder %s90, %s91
    %p105 = scmp.eq.s32.totalorder %s15, 1
    %p106 = por %p104, %p105
    %p108 = scmp.ne.s32.totalorder %s91, %s107
    %p109 = scmp.eq.s32.totalorder %s15, 0
    %p110 = por %p108, %p109
    %p111 = scmp.le.s32.totalorder 1, %s9
    %p112 = scmp.lt.s32.totalorder %s9, 3
    %p113 = pnand %p111, %p112
    %p114 = pneg %p113
    // Predicated region
    $region9: #{msca_forward.2} parent=5 // pred_check
      _
    $region10: #{msca_forward.2} parent=5 // pred_check_branch
      %116 = sbr.rel (%p113) target = $region12
    $region11: #{msca_forward.2} parent=5 // pred_region
      %s117 = ssub.s32 %s9, 1
    $region12: #{msca_forward.2} parent=5 // pred_fallthru
      _
    %p118 = scmp.lt.s32.totalorder %s9, 2
    // Predicated region
    $region13: #{msca_forward.2} parent=5 // pred_check
      %p119 = pneg %p118
    $region14: #{msca_forward.2} parent=5 // pred_check_branch
      %121 = sbr.rel (%p119) target = $region16
    $region15: #{msca_forward.2} parent=5 // pred_region
      // Predicated region
      $region17: #{msca_forward.2} parent=15 // pred_check
        %p122 = pneg %p43
      $region18: #{msca_forward.2} parent=15 // pred_check_branch
        %124 = sbr.rel (%p122) target = $region20
      $region19: #{msca_forward.2} parent=15 // pred_region
        %s125 = smul.u32 2, %s17
        %p126 = scmp.lt.s32.totalorder %s16, 1
        %s127 = scalar_select %p126, %s16, 1
        %p128 = scmp.lt.s32.totalorder %s125, 1
        %s129 = scalar_select %p128, %s125, 1
        %s130 = smul.addr %s127, 8
        %s131 = sadd.s32 %s129, %s130
        %s132 = smul.addr %s131, 8
        %s133 = scalar_lea.vmem %s0, %s132
        %s134 = smul.u32 2, %s17
      $region20: #{msca_forward.2} parent=15 // pred_fallthru
        _
    $region16: #{msca_forward.2} parent=5 // pred_fallthru
      _
    %p135 = scmp.le.s32.totalorder 1, %s9
    %p136 = scmp.lt.s32.totalorder %s9, 3
    %p137 = pnand %p135, %p136
    %p138 = pneg %p137
    // Predicated region
    $region21: #{msca_forward.2} parent=5 // pred_check
      _
    $region22: #{msca_forward.2} parent=5 // pred_check_branch
      %140 = sbr.rel (%p137) target = $region24
    $region23: #{msca_forward.2} parent=5 // pred_region
      %s141 = ssub.s32 %s9, 1
      %s142 = smul.u32 2, %s19
      %p143 = scmp.lt.s32.totalorder %s18, 1
      %s144 = scalar_select %p143, %s18, 1
      %p145 = scmp.lt.s32.totalorder %s142, 1
      %s146 = scalar_select %p145, %s142, 1
      %s147 = smul.addr %s144, 8
      %s148 = sadd.s32 %s146, %s147
      %s149 = smul.addr %s148, 8
      %s150 = scalar_lea.vmem %s0, %s149
      %p151 = pneg %p49
      %p152 = pneg %p46
      %p153 = pneg %p77
      %p154 = pneg %p74
      %s155 = smul.u32 2, %s19
      %p156 = scmp.lt.s32.totalorder %s18, 1
      %s157 = scalar_select %p156, %s18, 1
      %p158 = scmp.lt.s32.totalorder %s155, 1
      %s159 = scalar_select %p158, %s155, 1
      %s160 = smul.addr %s157, 8
      %s161 = sadd.s32 %s159, %s160
      %s162 = smul.addr %s161, 4
      %s163 = scalar_lea.vmem %s1, %s162
      %p164 = pneg %p103
      %p165 = pneg %p100
      %p166 = scmp.lt.s32.totalorder %s18, 1
      %s167 = scalar_select %p166, %s18, 1
      %s168 = smul.addr %s167, 4
      %s169 = smul.addr %s168, 8
      %s170 = scalar_lea.vmem %s2, %s169
      %s171 = smul.u32 2, %s19
      %p172 = scmp.lt.s32.totalorder %s18, 1
      %s173 = scalar_select %p172, %s18, 1
      %p174 = scmp.lt.s32.totalorder %s171, 1
      %s175 = scalar_select %p174, %s171, 1
      %s176 = smul.addr %s173, 8
      %s177 = sadd.s32 %s175, %s176
      %s178 = smul.addr %s177, 8
      %s179 = scalar_lea.vmem %s0, %s178
      %s180 = smul.u32 2, %s19
      %s181 = smul.u32 2, %s19
      %p182 = scmp.lt.s32.totalorder %s18, 1
      %s183 = scalar_select %p182, %s18, 1
      %p184 = scmp.lt.s32.totalorder %s181, 1
      %s185 = scalar_select %p184, %s181, 1
      %s186 = smul.addr %s183, 8
      %s187 = sadd.s32 %s185, %s186
      %s188 = smul.addr %s187, 4
      %s189 = scalar_lea.vmem %s1, %s188
      %s190 = smul.u32 2, %s19
      %p191 = scmp.lt.s32.totalorder %s18, 1
      %s192 = scalar_select %p191, %s18, 1
      %s193 = smul.addr %s192, 4
      %s194 = smul.addr %s193, 8
      %s195 = scalar_lea.vmem %s2, %s194
      %v196 = vld [vmem:[%s179] sm:$0xff]
      %v197 = vld [vmem:[%s179 + $0x8] sm:$0xff]
      %v198 = vld [vmem:[%s179 + $0x10] sm:$0xff]
      %v199 = vld [vmem:[%s179 + $0x18] sm:$0xff]
      %v200 = vld [vmem:[%s179 + $0x20] sm:$0xff]
      %v201 = vld [vmem:[%s179 + $0x28] sm:$0xff]
      %v202 = vld [vmem:[%s179 + $0x30] sm:$0xff]
      %v203 = vld [vmem:[%s179 + $0x38] sm:$0xff]
      %v204 = vpack.c.bf16 %v198, %v196
      %v205 = vpack.c.bf16 %v199, %v197
      %v206 = vpack.c.bf16 %v202, %v200
      %v207 = vpack.c.bf16 %v203, %v201
      %v212 = vunpack.c.l.b16 %v204
      %v213 = vunpack.c.l.b16 %v205
      %v214 = vunpack.c.h.b16 %v204
      %v215 = vunpack.c.h.b16 %v205
      %v216 = vunpack.c.l.b16 %v206
      %v217 = vunpack.c.l.b16 %v207
      %v218 = vunpack.c.h.b16 %v206
      %v219 = vunpack.c.h.b16 %v207
      %v220 = vpack.c.b16 %v213, %v212
      %v221 = vpack.c.b16 %v215, %v214
      %v222 = vpack.c.b16 %v217, %v216
      %v223 = vpack.c.b16 %v219, %v218
      %228 = vst [vmem:[%s189] sm:$0xff] %v220
      %229 = vst [vmem:[%s189 + $0x8] sm:$0xff] %v221
      %230 = vst [vmem:[%s189 + $0x10] sm:$0xff] %v222
      %231 = vst [vmem:[%s189 + $0x18] sm:$0xff] %v223
      %p232 = scmp.eq.s32.totalorder %s19, 0
      // Predicated region
      $region25: #{msca_forward.2} parent=23 // pred_check
        %p233 = pneg %p232
      $region26: #{msca_forward.2} parent=23 // pred_check_branch
        %235 = sbr.rel (%p233) target = $region28
      $region27: #{msca_forward.2} parent=23 // pred_region
        %vm236 = vcmask 7168
        %237 = vst.msk [vmem:[%s195] sm:$0xff] %vm236, 0.0
        %238 = vst.msk [vmem:[%s195 + $0x8] sm:$0xff] %vm236, 0.0
        %239 = vst.msk [vmem:[%s195 + $0x10] sm:$0xff] %vm236, 0.0
        %240 = vst.msk [vmem:[%s195 + $0x18] sm:$0xff] %vm236, 0.0
      $region28: #{msca_forward.2} parent=23 // pred_fallthru
        _
      %v241 = vld [vmem:[%s195] sm:$0xff]
      %v242 = vld [vmem:[%s195 + $0x8] sm:$0xff]
      %v243 = vld [vmem:[%s195 + $0x10] sm:$0xff]
      %v244 = vld [vmem:[%s195 + $0x18] sm:$0xff]
      %v245 = vadd.f32 %v196, %v197
      %246 = vadd.xlane.f32.xlu0 %v245
      %v247 = vpop.xlane.xlu0 %246
      %v248 = vadd.f32 %v198, %v199
      %249 = vadd.xlane.f32.xlu0 %v248
      %v250 = vpop.xlane.xlu0 %249
      %v251 = vadd.f32 %v200, %v201
      %252 = vadd.xlane.f32.xlu0 %v251
      %v253 = vpop.xlane.xlu0 %252
      %v254 = vadd.f32 %v202, %v203
      %255 = vadd.xlane.f32.xlu0 %v254
      %v256 = vpop.xlane.xlu0 %255
      %v257 = vadd.f32 %v241, %v247
      %v258 = vadd.f32 %v242, %v250
      %v259 = vadd.f32 %v243, %v253
      %v260 = vadd.f32 %v244, %v256
      %vm261 = vcmask 7168
      %262 = vst.msk [vmem:[%s195] sm:$0xff] %vm261, %v257
      %263 = vst.msk [vmem:[%s195 + $0x8] sm:$0xff] %vm261, %v258
      %264 = vst.msk [vmem:[%s195 + $0x10] sm:$0xff] %vm261, %v259
      %265 = vst.msk [vmem:[%s195 + $0x18] sm:$0xff] %vm261, %v260
      %s266 = smul.u32 2, %s19
      %p267 = scmp.lt.s32.totalorder %s18, 1
      %s268 = scalar_select %p267, %s18, 1
      %p269 = scmp.lt.s32.totalorder %s266, 1
      %s270 = scalar_select %p269, %s266, 1
      %s271 = smul.addr %s268, 8
      %s272 = sadd.s32 %s270, %s271
      %s273 = smul.addr %s272, 4
      %s274 = scalar_lea.vmem %s1, %s273
      %p275 = scmp.lt.s32.totalorder %s18, 1
      %s276 = scalar_select %p275, %s18, 1
      %s277 = smul.addr %s276, 4
      %s278 = smul.addr %s277, 8
      %s279 = scalar_lea.vmem %s2, %s278
      // Predicated region
      $region29: #{msca_forward.2} parent=23 // pred_check
        %p280 = pneg %p74
      $region30: #{msca_forward.2} parent=23 // pred_check_branch
        %282 = sbr.rel (%p280) target = $region32
      $region31: #{msca_forward.2} parent=23 // pred_region
        %s283 = smul.u32 2, %s19
      $region32: #{msca_forward.2} parent=23 // pred_fallthru
        _
      // Predicated region
      $region33: #{msca_forward.2} parent=23 // pred_check
        %p284 = pneg %p100
      $region34: #{msca_forward.2} parent=23 // pred_check_branch
        %286 = sbr.rel (%p284) target = $region36
      $region35: #{msca_forward.2} parent=23 // pred_region
        _
      $region36: #{msca_forward.2} parent=23 // pred_fallthru
        _
    $region24: #{msca_forward.2} parent=5 // pred_fallthru
      _
    %p287 = scmp.le.s32.totalorder 2, %s9
    // Predicated region
    $region37: #{msca_forward.2} parent=5 // pred_check
      %p288 = pneg %p287
    $region38: #{msca_forward.2} parent=5 // pred_check_branch
      %290 = sbr.rel (%p288) target = $region40
    $region39: #{msca_forward.2} parent=5 // pred_region
      %s291 = ssub.s32 %s9, 2
      // Predicated region
      $region41: #{msca_forward.2} parent=39 // pred_check
        %p292 = pneg %p80
      $region42: #{msca_forward.2} parent=39 // pred_check_branch
        %294 = sbr.rel (%p292) target = $region44
      $region43: #{msca_forward.2} parent=39 // pred_region
        %s295 = smul.u32 2, %s21
        %p296 = scmp.lt.s32.totalorder %s20, 1
        %s297 = scalar_select %p296, %s20, 1
        %p298 = scmp.lt.s32.totalorder %s295, 1
        %s299 = scalar_select %p298, %s295, 1
        %s300 = smul.addr %s297, 8
        %s301 = sadd.s32 %s299, %s300
        %s302 = smul.addr %s301, 4
        %s303 = scalar_lea.vmem %s1, %s302
      $region44: #{msca_forward.2} parent=39 // pred_fallthru
        _
      // Predicated region
      $region45: #{msca_forward.2} parent=39 // pred_check
        %p304 = pneg %p106
      $region46: #{msca_forward.2} parent=39 // pred_check_branch
        %306 = sbr.rel (%p304) target = $region48
      $region47: #{msca_forward.2} parent=39 // pred_region
        %p307 = scmp.lt.s32.totalorder %s20, 1
        %s308 = scalar_select %p307, %s20, 1
        %s309 = smul.addr %s308, 4
        %s310 = smul.addr %s309, 8
        %s311 = scalar_lea.vmem %s2, %s310
      $region48: #{msca_forward.2} parent=39 // pred_fallthru
        _
    $region40: #{msca_forward.2} parent=5 // pred_fallthru
      _
  $region6: #{msca_forward.2} parent=0 // loop_footer
    %s13 = sadd.s32 1, %s9
  $region7: #{msca_forward.2} parent=0 // loop_footer_branch
    %8 = sbr.rel target = $region3
  $region8: #{msca_forward.2} parent=0 // loop_exit
    _

// kernel: msca_forward.3
$region0: #{msca_forward.3}
  #allocation0 [shape = 'u32[]', space=smem, size = 0x4, offset = 0x4, fixed_abs, tag = 'smem constant byte address 0x4 - core index']
  #allocation1 [shape = 'u32[144,128]{1,0:T(1,128)}', space=vmem, size = 0x12000, scoped, tag = 'internal scratch']
  %s0 = inlined_call_operand.vmem [shape: bf16[2,32,256], index: 0, kind: input, shape index: {}]
  %s1 = inlined_call_operand.vmem [shape: bf16[2,32], index: 1, kind: input, shape index: {}]
  %s2 = inlined_call_operand.vmem [shape: f32[2,1], index: 2, kind: input, shape index: {}]
  %s3 = inlined_call_operand.vmem [shape: bf16[32,2], index: 3, kind: input, shape index: {}]
  %s4 = inlined_call_operand.vmem [shape: f32[2,32,1], index: 4, kind: input, shape index: {}]
  %s5 = inlined_call_operand.vmem [shape: bf16[2,32,256], index: 5, kind: output, shape index: {}]
  %s6 = sld [smem:[#allocation0]]
  $region53: #{msca_forward.3} parent=0
    _
  %s8 = ssub.s32 1, %s6
  %s9 = scalar_select 0, %s8, %s6
  loop: start=0, step=1, limit=4
  $region2: #{msca_forward.3} parent=0 // loop_pre_header
    _
  $region3: #{msca_forward.3} parent=0 // loop_header
    %s11 = sphi 0, %s15
    %p12 = scmp.ge.s32.totalorder %s11, 4
    %s18 = sphi 0, %s30
    %s19 = sphi 0, %s26
    %s20 = sphi 0, %s18
    %s21 = sphi 0, %s19
    %s22 = sphi 0, %s20
    %s23 = sphi 0, %s21
    %s35 = sphi 0, %s37
    %s38 = sphi 0, %s35
    %s39 = sphi 0, %s38
    %s55 = sphi 0, %s39
    %s59 = sphi 0, %s59
    %s61 = sphi 0, %s59
    %s62 = sphi 0, %s61
    %s76 = sphi 0, %s62
    %s80 = sphi 0, %s80
    %s82 = sphi 0, %s80
    %s83 = sphi 0, %s82
    %s97 = sphi 0, %s83
    %s101 = sphi 0, %s101
    %s103 = sphi 0, %s101
    %s104 = sphi 0, %s103
    %s118 = sphi 0, %s104
    %s124 = sphi 0, %s126
    %s127 = sphi 0, %s124
    %s128 = sphi 0, %s127
    %s144 = sphi 0, %s128
    %s152 = sphi 0, %s154
    %s155 = sphi 0, %s152
    %s156 = sphi 0, %s155
    %s172 = sphi 0, %s156
  $region4: #{msca_forward.3} parent=0 // loop_header_branch
    %14 = sbr.rel (%p12) target = $region8
  $region5: #{msca_forward.3} parent=0 // loop_body
    %s16 = ssub.s32 %s11, 1
    %s17 = ssub.s32 %s11, 2
    %s24 = sadd.s32 1, %s19
    %p25 = scmp.ge.s32.totalorder %s24, 1
    %s26 = scalar_select %p25, 0, %s24
    %s27 = sadd.s32 1, %s18
    %s28 = scalar_select %p25, %s27, %s18
    %p29 = scmp.ge.s32.totalorder %s28, 2
    %s30 = scalar_select %p29, 0, %s28
    %s31 = ssub.s32 %s18, %s30
    %s32 = ssub.s32 %s19, %s26
    %s33 = sor.u32 %s31, %s32
    %p34 = scmp.eq.s32.totalorder %s33, 0
    %s36 = sadd.s32 %s35, 1
    %s37 = scalar_select %p34, %s35, %s36
    %p40 = pneg %p34
    %p41 = scmp.eq.s32.totalorder %s11, 1
    %p42 = por %p40, %p41
    %p43 = scmp.ne.s32.totalorder %s35, %s38
    %p44 = scmp.eq.s32.totalorder %s11, 0
    %p45 = por %p43, %p44
    %p46 = scmp.ne.s32.totalorder %s35, %s38
    %p47 = scmp.eq.s32.totalorder %s16, 1
    %p48 = por %p46, %p47
    %p49 = scmp.ne.s32.totalorder %s38, %s39
    %p50 = scmp.eq.s32.totalorder %s16, 0
    %p51 = por %p49, %p50
    %p52 = scmp.ne.s32.totalorder %s38, %s39
    %p53 = scmp.eq.s32.totalorder %s17, 1
    %p54 = por %p52, %p53
    %p56 = scmp.ne.s32.totalorder %s39, %s55
    %p57 = scmp.eq.s32.totalorder %s17, 0
    %p58 = por %p56, %p57
    %s60 = sadd.s32 %s59, 1
    %p63 = scmp.eq.s32.totalorder %s11, 1
    %p64 = scmp.ne.s32.totalorder %s59, %s61
    %p65 = scmp.eq.s32.totalorder %s11, 0
    %p66 = por %p64, %p65
    %p67 = scmp.ne.s32.totalorder %s59, %s61
    %p68 = scmp.eq.s32.totalorder %s16, 1
    %p69 = por %p67, %p68
    %p70 = scmp.ne.s32.totalorder %s61, %s62
    %p71 = scmp.eq.s32.totalorder %s16, 0
    %p72 = por %p70, %p71
    %p73 = scmp.ne.s32.totalorder %s61, %s62
    %p74 = scmp.eq.s32.totalorder %s17, 1
    %p75 = por %p73, %p74
    %p77 = scmp.ne.s32.totalorder %s62, %s76
    %p78 = scmp.eq.s32.totalorder %s17, 0
    %p79 = por %p77, %p78
    %s81 = sadd.s32 %s80, 1
    %p84 = scmp.eq.s32.totalorder %s11, 1
    %p85 = scmp.ne.s32.totalorder %s80, %s82
    %p86 = scmp.eq.s32.totalorder %s11, 0
    %p87 = por %p85, %p86
    %p88 = scmp.ne.s32.totalorder %s80, %s82
    %p89 = scmp.eq.s32.totalorder %s16, 1
    %p90 = por %p88, %p89
    %p91 = scmp.ne.s32.totalorder %s82, %s83
    %p92 = scmp.eq.s32.totalorder %s16, 0
    %p93 = por %p91, %p92
    %p94 = scmp.ne.s32.totalorder %s82, %s83
    %p95 = scmp.eq.s32.totalorder %s17, 1
    %p96 = por %p94, %p95
    %p98 = scmp.ne.s32.totalorder %s83, %s97
    %p99 = scmp.eq.s32.totalorder %s17, 0
    %p100 = por %p98, %p99
    %s102 = sadd.s32 %s101, 1
    %p105 = scmp.eq.s32.totalorder %s11, 1
    %p106 = scmp.ne.s32.totalorder %s101, %s103
    %p107 = scmp.eq.s32.totalorder %s11, 0
    %p108 = por %p106, %p107
    %p109 = scmp.ne.s32.totalorder %s101, %s103
    %p110 = scmp.eq.s32.totalorder %s16, 1
    %p111 = por %p109, %p110
    %p112 = scmp.ne.s32.totalorder %s103, %s104
    %p113 = scmp.eq.s32.totalorder %s16, 0
    %p114 = por %p112, %p113
    %p115 = scmp.ne.s32.totalorder %s103, %s104
    %p116 = scmp.eq.s32.totalorder %s17, 1
    %p117 = por %p115, %p116
    %p119 = scmp.ne.s32.totalorder %s104, %s118
    %p120 = scmp.eq.s32.totalorder %s17, 0
    %p121 = por %p119, %p120
    %s122 = ssub.s32 %s18, %s30
    %p123 = scmp.eq.s32.totalorder %s122, 0
    %s125 = sadd.s32 %s124, 1
    %s126 = scalar_select %p123, %s124, %s125
    %p129 = pneg %p123
    %p130 = scmp.eq.s32.totalorder %s11, 1
    %p131 = por %p129, %p130
    %p132 = scmp.ne.s32.totalorder %s124, %s127
    %p133 = scmp.eq.s32.totalorder %s11, 0
    %p134 = por %p132, %p133
    %p135 = scmp.ne.s32.totalorder %s124, %s127
    %p136 = scmp.eq.s32.totalorder %s16, 1
    %p137 = por %p135, %p136
    %p138 = scmp.ne.s32.totalorder %s127, %s128
    %p139 = scmp.eq.s32.totalorder %s16, 0
    %p140 = por %p138, %p139
    %p141 = scmp.ne.s32.totalorder %s127, %s128
    %p142 = scmp.eq.s32.totalorder %s17, 1
    %p143 = por %p141, %p142
    %p145 = scmp.ne.s32.totalorder %s128, %s144
    %p146 = scmp.eq.s32.totalorder %s17, 0
    %p147 = por %p145, %p146
    %s148 = ssub.s32 %s18, %s30
    %s149 = ssub.s32 %s19, %s26
    %s150 = sor.u32 %s148, %s149
    %p151 = scmp.eq.s32.totalorder %s150, 0
    %s153 = sadd.s32 %s152, 1
    %s154 = scalar_select %p151, %s152, %s153
    %p157 = pneg %p151
    %p158 = scmp.eq.s32.totalorder %s11, 1
    %p159 = por %p157, %p158
    %p160 = scmp.ne.s32.totalorder %s152, %s155
    %p161 = scmp.eq.s32.totalorder %s11, 0
    %p162 = por %p160, %p161
    %p163 = scmp.ne.s32.totalorder %s152, %s155
    %p164 = scmp.eq.s32.totalorder %s16, 1
    %p165 = por %p163, %p164
    %p166 = scmp.ne.s32.totalorder %s155, %s156
    %p167 = scmp.eq.s32.totalorder %s16, 0
    %p168 = por %p166, %p167
    %p169 = scmp.ne.s32.totalorder %s155, %s156
    %p170 = scmp.eq.s32.totalorder %s17, 1
    %p171 = por %p169, %p170
    %p173 = scmp.ne.s32.totalorder %s156, %s172
    %p174 = scmp.eq.s32.totalorder %s17, 0
    %p175 = por %p173, %p174
    %p176 = scmp.le.s32.totalorder 1, %s11
    %p177 = scmp.lt.s32.totalorder %s11, 3
    %p178 = pnand %p176, %p177
    %p179 = pneg %p178
    // Predicated region
    $region9: #{msca_forward.3} parent=5 // pred_check
      _
    $region10: #{msca_forward.3} parent=5 // pred_check_branch
      %181 = sbr.rel (%p178) target = $region12
    $region11: #{msca_forward.3} parent=5 // pred_region
      %s182 = ssub.s32 %s11, 1
      // Predicated region
      $region13: #{msca_forward.3} parent=11 // pred_check
        %p183 = pneg %p72
      $region14: #{msca_forward.3} parent=11 // pred_check_branch
        %185 = sbr.rel (%p183) target = $region16
      $region15: #{msca_forward.3} parent=11 // pred_region
        _
      $region16: #{msca_forward.3} parent=11 // pred_fallthru
        _
      // Predicated region
      $region17: #{msca_forward.3} parent=11 // pred_check
        %p186 = pneg %p93
      $region18: #{msca_forward.3} parent=11 // pred_check_branch
        %188 = sbr.rel (%p186) target = $region20
      $region19: #{msca_forward.3} parent=11 // pred_region
        _
      $region20: #{msca_forward.3} parent=11 // pred_fallthru
        _
      // Predicated region
      $region21: #{msca_forward.3} parent=11 // pred_check
        %p189 = pneg %p114
      $region22: #{msca_forward.3} parent=11 // pred_check_branch
        %191 = sbr.rel (%p189) target = $region24
      $region23: #{msca_forward.3} parent=11 // pred_region
        _
      $region24: #{msca_forward.3} parent=11 // pred_fallthru
        _
    $region12: #{msca_forward.3} parent=5 // pred_fallthru
      _
    %p192 = scmp.lt.s32.totalorder %s11, 2
    // Predicated region
    $region25: #{msca_forward.3} parent=5 // pred_check
      %p193 = pneg %p192
    $region26: #{msca_forward.3} parent=5 // pred_check_branch
      %195 = sbr.rel (%p193) target = $region28
    $region27: #{msca_forward.3} parent=5 // pred_region
      // Predicated region
      $region29: #{msca_forward.3} parent=27 // pred_check
        %p196 = pneg %p45
      $region30: #{msca_forward.3} parent=27 // pred_check_branch
        %198 = sbr.rel (%p196) target = $region32
      $region31: #{msca_forward.3} parent=27 // pred_region
        %s199 = smul.u32 2, %s19
        %p200 = scmp.lt.s32.totalorder %s18, 1
        %s201 = scalar_select %p200, %s18, 1
        %p202 = scmp.lt.s32.totalorder %s199, 1
        %s203 = scalar_select %p202, %s199, 1
        %s204 = smul.addr %s201, 8
        %s205 = sadd.s32 %s203, %s204
        %s206 = smul.addr %s205, 4
        %s207 = scalar_lea.vmem %s0, %s206
        %s208 = smul.u32 2, %s19
      $region32: #{msca_forward.3} parent=27 // pred_fallthru
        _
      // Predicated region
      $region33: #{msca_forward.3} parent=27 // pred_check
        %p209 = pneg %p134
      $region34: #{msca_forward.3} parent=27 // pred_check_branch
        %211 = sbr.rel (%p209) target = $region36
      $region35: #{msca_forward.3} parent=27 // pred_region
        %p212 = scmp.lt.s32.totalorder %s18, 1
        %s213 = scalar_select %p212, %s18, 1
        %s214 = smul.addr %s213, 4
        %s215 = smul.addr %s214, 8
        %s216 = scalar_lea.vmem %s4, %s215
      $region36: #{msca_forward.3} parent=27 // pred_fallthru
        _
    $region28: #{msca_forward.3} parent=5 // pred_fallthru
      _
    %p217 = scmp.le.s32.totalorder 1, %s11
    %p218 = scmp.lt.s32.totalorder %s11, 3
    %p219 = pnand %p217, %p218
    %p220 = pneg %p219
    // Predicated region
    $region37: #{msca_forward.3} parent=5 // pred_check
      _
    $region38: #{msca_forward.3} parent=5 // pred_check_branch
      %222 = sbr.rel (%p219) target = $region40
    $region39: #{msca_forward.3} parent=5 // pred_region
      %s223 = ssub.s32 %s11, 1
      %s224 = smul.u32 2, %s21
      %p225 = scmp.lt.s32.totalorder %s20, 1
      %s226 = scalar_select %p225, %s20, 1
      %p227 = scmp.lt.s32.totalorder %s224, 1
      %s228 = scalar_select %p227, %s224, 1
      %s229 = smul.addr %s226, 8
      %s230 = sadd.s32 %s228, %s229
      %s231 = smul.addr %s230, 4
      %s232 = scalar_lea.vmem %s0, %s231
      %p233 = pneg %p51
      %p234 = pneg %p48
      %p235 = pneg %p72
      %p236 = pneg %p69
      %p237 = pneg %p93
      %p238 = pneg %p90
      %p239 = pneg %p114
      %p240 = pneg %p111
      %p241 = scmp.lt.s32.totalorder %s20, 1
      %s242 = scalar_select %p241, %s20, 1
      %s243 = smul.addr %s242, 4
      %s244 = smul.addr %s243, 8
      %s245 = scalar_lea.vmem %s4, %s244
      %p246 = pneg %p140
      %p247 = pneg %p137
      %p248 = pneg %p168
      %p249 = pneg %p165
      %s250 = smul.u32 2, %s21
      %p251 = scmp.lt.s32.totalorder %s20, 1
      %s252 = scalar_select %p251, %s20, 1
      %p253 = scmp.lt.s32.totalorder %s250, 1
      %s254 = scalar_select %p253, %s250, 1
      %s255 = smul.addr %s252, 8
      %s256 = sadd.s32 %s254, %s255
      %s257 = smul.addr %s256, 4
      %s258 = scalar_lea.vmem %s5, %s257
      %s259 = smul.u32 2, %s21
      %p260 = scmp.lt.s32.totalorder %s20, 1
      %s261 = scalar_select %p260, %s20, 1
      %p262 = scmp.lt.s32.totalorder %s259, 1
      %s263 = scalar_select %p262, %s259, 1
      %s264 = smul.addr %s261, 8
      %s265 = sadd.s32 %s263, %s264
      %s266 = smul.addr %s265, 4
      %s267 = scalar_lea.vmem %s0, %s266
      %s268 = smul.u32 2, %s21
      %p269 = scmp.lt.s32.totalorder %s20, 1
      %s270 = scalar_select %p269, %s20, 1
      %s271 = smul.addr %s270, 4
      %s272 = smul.addr %s271, 8
      %s273 = scalar_lea.vmem %s4, %s272
      %s274 = smul.u32 2, %s21
      %p275 = scmp.lt.s32.totalorder %s20, 1
      %s276 = scalar_select %p275, %s20, 1
      %p277 = scmp.lt.s32.totalorder %s274, 1
      %s278 = scalar_select %p277, %s274, 1
      %s279 = smul.addr %s276, 8
      %s280 = sadd.s32 %s278, %s279
      %s281 = smul.addr %s280, 4
      %s282 = scalar_lea.vmem %s5, %s281
      %s283 = smul.u32 2, %s21
      %v285 = vld [vmem:[%s267] sm:$0xff]
      %v286 = vld [vmem:[%s267 + $0x8] sm:$0xff]
      %v287 = vld [vmem:[%s267 + $0x10] sm:$0xff]
      %v288 = vld [vmem:[%s267 + $0x18] sm:$0xff]
      %v289 = vld [vmem:[%s1] sm:$0x1]
      %v290 = vld [vmem:[%s2] sm:$0x3]
      %292 = vset.pattern.permute.xlu0 0
      %293 = vperm.xlu0 %292, %v290
      %v294 = vpop.permute.xlu0 %293
      %v300 = vunpack.c.l.b16 %v285
      %v301 = vunpack.c.h.b16 %v285
      %v302 = vunpack.c.l.b16 %v286
      %v303 = vunpack.c.h.b16 %v286
      %v304 = vunpack.c.l.b16 %v287
      %v305 = vunpack.c.h.b16 %v287
      %v306 = vunpack.c.l.b16 %v288
      %v307 = vunpack.c.h.b16 %v288
      %v308 = vpack.c.b16 %v302, %v300
      %v309 = vpack.c.b16 %v303, %v301
      %v310 = vpack.c.b16 %v306, %v304
      %v311 = vpack.c.b16 %v307, %v305
      %vm316 = vcmask 261120
      %v318 = vsel %vm316, %v289, 0
      %320 = vmatprep.subr.bf16.mxu0 0
      %321 = vmatpush1.bf16.msra.mxu0 0
      %322 = vmatprep.subr.bf16.mxu0 0
      %323 = vmatpush1.bf16.msra.mxu0 0
      %324 = vmatprep.subr.bf16.mxu0 0
      %325 = vmatpush1.bf16.msra.mxu0 0
      %326 = vmatprep.subr.bf16.mxu0 0
      %327 = vmatpush1.bf16.msra.mxu0 0
      %328 = vmatprep.subr.bf16.mxu0 0
      %329 = vmatpush1.bf16.msra.mxu0 0
      %330 = vmatprep.subr.bf16.mxu0 0
      %331 = vmatpush1.bf16.msra.mxu0 0
      %332 = vmatprep.subr.bf16.mxu0 %v311
      %333 = vmatpush1.bf16.msra.mxu0 %v310
      %334 = vmatprep.subr.bf16.mxu0 %v309
      %335 = vmatpush1.bf16.msra.mxu0 %v308
      %336 = vmatprep.subr.bf16.mxu0 0
      %337 = vmatpush2.bf16.msra.mxu0 0
      %338 = vmatprep.subr.bf16.mxu0 0
      %339 = vmatpush2.bf16.msra.mxu0 0
      %340 = vmatprep.subr.bf16.mxu0 0
      %341 = vmatpush2.bf16.msra.mxu0 0
      %342 = vmatprep.subr.bf16.mxu0 0
      %343 = vmatpush2.bf16.msra.mxu0 0
      %344 = vmatprep.subr.bf16.mxu0 0
      %345 = vmatpush2.bf16.msra.mxu0 0
      %346 = vmatprep.subr.bf16.mxu0 0
      %347 = vmatpush2.bf16.msra.mxu0 0
      %348 = vmatprep.subr.bf16.mxu0 0
      %349 = vmatpush2.bf16.msra.mxu0 0
      %350 = vmatprep.subr.bf16.mxu0 0
      %351 = vmatpush2.bf16.msra.mxu0 0
      %352 = vmatprep.mubr.bf16.mxu0 0
      %353 = vmatmul.mubr.bf16.gmra.mxu0 %v318
      %v354 = vpop.f32.mrf.mxu0
      %v355 = vadd.f32 %v294, %v354
      %v356 = vpop.f32.mrf.mxu0
      %v357 = vadd.f32 %v294, %v356
      %v358 = vpop.f32.mrf.mxu0
      %v359 = vpop.f32.mrf.mxu0
      %360 = vdwg.mxu0
      %v361 = vmax.f32 %v355, 0.0
      %v362 = vmax.f32 %v357, 0.0
      %v363 = vpack.c.bf16 %v361, %v361
      %v364 = vpack.c.bf16 %v362, %v362
      %v365 = vld [vmem:[%s3] sm:$0xf]
      %v366 = vld [vmem:[%s3 + $0x4] sm:$0xf]
      %v367 = vld [vmem:[%s3 + $0x8] sm:$0xf]
      %v368 = vld [vmem:[%s3 + $0xc] sm:$0xf]
      %v369 = vld [vmem:[%s273] sm:$0xff]
      %v370 = vld [vmem:[%s273 + $0x8] sm:$0xff]
      %v371 = vld [vmem:[%s273 + $0x10] sm:$0xff]
      %v372 = vld [vmem:[%s273 + $0x18] sm:$0xff]
      %374 = vset.pattern.permute.xlu0 0
      %375 = vperm.xlu0 %374, %v369
      %v376 = vpop.permute.xlu0 %375
      %379 = vset.pattern.permute.xlu0 0
      %380 = vperm.xlu0 %379, %v370
      %v381 = vpop.permute.xlu0 %380
      %384 = vset.pattern.permute.xlu0 0
      %385 = vperm.xlu0 %384, %v371
      %v386 = vpop.permute.xlu0 %385
      %389 = vset.pattern.permute.xlu0 0
      %390 = vperm.xlu0 %389, %v372
      %v391 = vpop.permute.xlu0 %390
      %v397 = vunpack.c.l.b16 %v365
      %v398 = vunpack.c.l.b16 %v366
      %v399 = vunpack.c.l.b16 %v367
      %v400 = vunpack.c.l.b16 %v368
      %v401 = vpack.c.b16 %v398, %v397
      %v402 = vpack.c.b16 %v400, %v399
      %vm403 = vcmask 15360
      %v405 = vsel %vm403, %v401, 0
      %v408 = vsel %vm403, %v402, 0
      %vm410 = vcmask 1040384
      %v412 = vsel %vm410, %v363, 0
      %v415 = vsel %vm410, %v364, 0
      %417 = vmatprep.subr.bf16.mxu0 0
      %418 = vmatpush1.bf16.msra.mxu0 0
      %419 = vmatprep.subr.bf16.mxu0 0
      %420 = vmatpush1.bf16.msra.mxu0 0
      %421 = vmatprep.subr.bf16.mxu0 0
      %422 = vmatpush1.bf16.msra.mxu0 0
      %423 = vmatprep.subr.bf16.mxu0 0
      %424 = vmatpush1.bf16.msra.mxu0 0
      %425 = vmatprep.subr.bf16.mxu0 0
      %426 = vmatpush1.bf16.msra.mxu0 0
      %427 = vmatprep.subr.bf16.mxu0 0
      %428 = vmatpush1.bf16.msra.mxu0 0
      %429 = vmatprep.subr.bf16.mxu0 0
      %430 = vmatpush1.bf16.msra.mxu0 0
      %431 = vmatprep.subr.bf16.mxu0 %v415
      %432 = vmatpush1.bf16.msra.mxu0 %v412
      %433 = vmatprep.subr.bf16.mxu0 0
      %434 = vmatpush2.bf16.msra.mxu0 0
      %435 = vmatprep.subr.bf16.mxu0 0
      %436 = vmatpush2.bf16.msra.mxu0 0
      %437 = vmatprep.subr.bf16.mxu0 0
      %438 = vmatpush2.bf16.msra.mxu0 0
      %439 = vmatprep.subr.bf16.mxu0 0
      %440 = vmatpush2.bf16.msra.mxu0 0
      %441 = vmatprep.subr.bf16.mxu0 0
      %442 = vmatpush2.bf16.msra.mxu0 0
      %443 = vmatprep.subr.bf16.mxu0 0
      %444 = vmatpush2.bf16.msra.mxu0 0
      %445 = vmatprep.subr.bf16.mxu0 0
      %446 = vmatpush2.bf16.msra.mxu0 0
      %447 = vmatprep.subr.bf16.mxu0 0
      %448 = vmatpush2.bf16.msra.mxu0 0
      %449 = vmatprep.mubr.bf16.mxu0 0
      %450 = vmatmul.mubr.bf16.gmra.mxu0 %v405
      %v451 = vpop.f32.mrf.mxu0
      %v452 = vadd.f32 %v376, %v451
      %v453 = vpop.f32.mrf.mxu0
      %v454 = vadd.f32 %v376, %v453
      %v455 = vpop.f32.mrf.mxu0
      %v456 = vadd.f32 %v381, %v455
      %v457 = vpop.f32.mrf.mxu0
      %v458 = vadd.f32 %v381, %v457
      %459 = vmatprep.mubr.bf16.mxu0 0
      %460 = vmatmul.mubr.bf16.gmra.mxu0 %v408
      %v461 = vpop.f32.mrf.mxu0
      %v462 = vadd.f32 %v386, %v461
      %v463 = vpop.f32.mrf.mxu0
      %v464 = vadd.f32 %v386, %v463
      %v465 = vpop.f32.mrf.mxu0
      %v466 = vadd.f32 %v391, %v465
      %v467 = vpop.f32.mrf.mxu0
      %v468 = vadd.f32 %v391, %v467
      %469 = vdwg.mxu0
      %v470 = vsub.f32 0.0, %v452
      %v471 = vsub.f32 0.0, %v454
      %v472 = vsub.f32 0.0, %v456
      %v473 = vsub.f32 0.0, %v458
      %v474 = vsub.f32 0.0, %v462
      %v475 = vsub.f32 0.0, %v464
      %v476 = vsub.f32 0.0, %v466
      %v477 = vsub.f32 0.0, %v468
      %v478 = vmul.f32 %v470, 1.442695
      %v479 = vpow.pop %v478
      %v480 = vmul.f32 %v471, 1.442695
      %v481 = vpow.pop %v480
      %v482 = vmul.f32 %v472, 1.442695
      %v483 = vpow.pop %v482
      %v484 = vmul.f32 %v473, 1.442695
      %v485 = vpow.pop %v484
      %v486 = vmul.f32 %v474, 1.442695
      %v487 = vpow.pop %v486
      %v488 = vmul.f32 %v475, 1.442695
      %v489 = vpow.pop %v488
      %v490 = vmul.f32 %v476, 1.442695
      %v491 = vpow.pop %v490
      %v492 = vmul.f32 %v477, 1.442695
      %v493 = vpow.pop %v492
      %v494 = vadd.f32 %v479, 1.0
      %v495 = vadd.f32 %v481, 1.0
      %v496 = vadd.f32 %v483, 1.0
      %v497 = vadd.f32 %v485, 1.0
      %v498 = vadd.f32 %v487, 1.0
      %v499 = vadd.f32 %v489, 1.0
      %v500 = vadd.f32 %v491, 1.0
      %v501 = vadd.f32 %v493, 1.0
      %v502 = vrcp.pop %v494
      %v503 = vrcp.pop %v495
      %v504 = vrcp.pop %v496
      %v505 = vrcp.pop %v497
      %v506 = vrcp.pop %v498
      %v507 = vrcp.pop %v499
      %v508 = vrcp.pop %v500
      %v509 = vrcp.pop %v501
      %v510 = vpack.c.bf16 %v504, %v502
      %v511 = vpack.c.bf16 %v505, %v503
      %v512 = vpack.c.bf16 %v508, %v506
      %v513 = vpack.c.bf16 %v509, %v507
      %v518 = vunpack.c.l.b16 %v510
      %v519 = vunpack.c.l.b16 %v511
      %v520 = vunpack.c.h.b16 %v510
      %v521 = vunpack.c.h.b16 %v511
      %v522 = vunpack.c.l.b16 %v512
      %v523 = vunpack.c.l.b16 %v513
      %v524 = vunpack.c.h.b16 %v512
      %v525 = vunpack.c.h.b16 %v513
      %v526 = vpack.c.b16 %v519, %v518
      %v527 = vpack.c.b16 %v521, %v520
      %v528 = vpack.c.b16 %v523, %v522
      %v529 = vpack.c.b16 %v525, %v524
      %v534 = vmul.bf16 %v285, %v526
      %v535 = vmul.bf16 %v286, %v527
      %v536 = vmul.bf16 %v287, %v528
      %v537 = vmul.bf16 %v288, %v529
      %538 = vst [vmem:[%s282] sm:$0xff] %v534
      %539 = vst [vmem:[%s282 + $0x8] sm:$0xff] %v535
      %540 = vst [vmem:[%s282 + $0x10] sm:$0xff] %v536
      %541 = vst [vmem:[%s282 + $0x18] sm:$0xff] %v537
      %s542 = smul.u32 2, %s21
      %p543 = scmp.lt.s32.totalorder %s20, 1
      %s544 = scalar_select %p543, %s20, 1
      %p545 = scmp.lt.s32.totalorder %s542, 1
      %s546 = scalar_select %p545, %s542, 1
      %s547 = smul.addr %s544, 8
      %s548 = sadd.s32 %s546, %s547
      %s549 = smul.addr %s548, 4
      %s550 = scalar_lea.vmem %s5, %s549
      // Predicated region
      $region41: #{msca_forward.3} parent=39 // pred_check
        %p551 = pneg %p165
      $region42: #{msca_forward.3} parent=39 // pred_check_branch
        %553 = sbr.rel (%p551) target = $region44
      $region43: #{msca_forward.3} parent=39 // pred_region
        %s554 = smul.u32 2, %s21
      $region44: #{msca_forward.3} parent=39 // pred_fallthru
        _
    $region40: #{msca_forward.3} parent=5 // pred_fallthru
      _
    %p555 = scmp.le.s32.totalorder 2, %s11
    // Predicated region
    $region45: #{msca_forward.3} parent=5 // pred_check
      %p556 = pneg %p555
    $region46: #{msca_forward.3} parent=5 // pred_check_branch
      %558 = sbr.rel (%p556) target = $region48
    $region47: #{msca_forward.3} parent=5 // pred_region
      %s559 = ssub.s32 %s11, 2
      // Predicated region
      $region49: #{msca_forward.3} parent=47 // pred_check
        %p560 = pneg %p171
      $region50: #{msca_forward.3} parent=47 // pred_check_branch
        %562 = sbr.rel (%p560) target = $region52
      $region51: #{msca_forward.3} parent=47 // pred_region
        %s563 = smul.u32 2, %s23
        %p564 = scmp.lt.s32.totalorder %s22, 1
        %s565 = scalar_select %p564, %s22, 1
        %p566 = scmp.lt.s32.totalorder %s563, 1
        %s567 = scalar_select %p566, %s563, 1
        %s568 = smul.addr %s565, 8
        %s569 = sadd.s32 %s567, %s568
        %s570 = smul.addr %s569, 4
        %s571 = scalar_lea.vmem %s5, %s570
      $region52: #{msca_forward.3} parent=47 // pred_fallthru
        _
    $region48: #{msca_forward.3} parent=5 // pred_fallthru
      _
  $region6: #{msca_forward.3} parent=0 // loop_footer
    %s15 = sadd.s32 1, %s11
  $region7: #{msca_forward.3} parent=0 // loop_footer_branch
    %10 = sbr.rel target = $region3
  $region8: #{msca_forward.3} parent=0 // loop_exit
    _

</llo_original>
